<compile_context>
chip_gen: v7x
topology: tpu7x:2x2x1
jax: 0.10.0
libtpu: 0.0.40
codegen_flags: <defaults>
</compile_context>

<pallas_src>
import jax
import jax.numpy as jnp
from jax.experimental import pallas as pl
from jax.experimental.pallas import tpu as pltpu


# --------------------- fused embedding + LSTM + maxpool + MLP-head kernel ---------------------

def fused_lstm_classifier_kernel(ids_ref, embed_ref, wihT_ref, bias_ref,
                                 whhT_ref, w1T_ref, b1_ref, w2T_ref, b2_ref,
                                 out_ref):
    """Single-invocation kernel (grid=()).

    ids_ref   : (T*B, 1) int32 token ids, row-major over (T, B).
    embed_ref : (V, E)   embedding table.
    wihT_ref  : (E, 4H)  input->hidden weights, pre-transposed (PyTorch gate order i,f,g,o).
    bias_ref  : (1, 4H)  b_ih + b_hh.
    whhT_ref  : (H, 4H)  hidden->hidden weights, pre-transposed.
    w1T_ref   : (H, 16)  Linear(hidden, 16) weights, pre-transposed.
    b1_ref    : (1, 16)
    w2T_ref   : (16, O)  Linear(16, output) weights, pre-transposed.
    b2_ref    : (1, O)
    out_ref   : (T, O)   final logits (written once, at the end).
    """
    TB = ids_ref.shape[0]
    V = embed_ref.shape[0]
    H = whhT_ref.shape[0]
    T = out_ref.shape[0]
    B = TB // T

    # 1) Fold the input projection and both LSTM biases into the embedding table once
    #    (one small MXU op, off the recurrent critical path):  folded[v] = E[v]@W_ih^T + b.
    folded = jnp.dot(embed_ref[...], wihT_ref[...],
                     preferred_element_type=jnp.float32) + bias_ref[...]        # (V, 4H)

    # 2) "Embedding lookup" for ALL T*B tokens as a single one-hot matmul on the MXU —
    #    no data-dependent loads, fully vectorized, done once before the recurrence.
    ids = ids_ref[...]                                                          # (T*B, 1)
    onehot = (jax.lax.broadcasted_iota(jnp.int32, (TB, V), 1) == ids).astype(jnp.float32)
    gx = jnp.dot(onehot, folded, preferred_element_type=jnp.float32)            # (T*B, 4H)

    whh = whhT_ref[...]                     # (H, 4H), loaded once
    h = jnp.zeros((B, H), jnp.float32)      # register-resident recurrent state
    c = jnp.zeros((B, H), jnp.float32)

    mp_rows = []
    # T is small and static -> fully unrolled in-kernel time loop (no grid overhead).
    for t in range(T):
        # Only h @ W_hh^T remains on the recurrent critical path.
        gates = gx[t * B:(t + 1) * B, :] + jnp.dot(h, whh,
                                                   preferred_element_type=jnp.float32)  # (B, 4H)

        # Two full-width EUP passes instead of four partial-lane ones, then lane slices.
        sig = jax.nn.sigmoid(gates)
        tnh = jnp.tanh(gates)
        i_g = sig[:, 0:H]
        f_g = sig[:, H:2 * H]
        g_g = tnh[:, 2 * H:3 * H]
        o_g = sig[:, 3 * H:4 * H]

        c = f_g * c + i_g * g_g
        h = o_g * jnp.tanh(c)

        # output[t] == h_t ; torch.max(output, 1) => max over the LSTM batch axis.
        mp_rows.append(jnp.max(h, axis=0, keepdims=True))   # (1, H)

    maxpool = jnp.concatenate(mp_rows, axis=0)               # (T, H), stays in VMEM/vregs

    # Fused MLP head: Linear(H,16) -> ReLU -> Linear(16,O).
    hid = jnp.dot(maxpool, w1T_ref[...], preferred_element_type=jnp.float32) + b1_ref[...]
    hid = jnp.maximum(hid, 0.0)
    out_ref[...] = jnp.dot(hid, w2T_ref[...], preferred_element_type=jnp.float32) + b2_ref[...]


# ----------------------------- Full forward -----------------------------

@jax.jit
def lstm_classifier_forward(x_ids, params):
    """x_ids: (T, B) int token ids (T = LSTM time axis, B = LSTM batch axis)."""
    T, B = x_ids.shape
    O = params["w2"].shape[0]

    # Wrapper does layout plumbing only (reshapes / transposes of tiny parameters);
    # all compute — embedding lookup, LSTM, maxpool, MLP head — runs inside one kernel.
    return pl.pallas_call(
        fused_lstm_classifier_kernel,
        out_shape=jax.ShapeDtypeStruct((T, O), jnp.float32),
        in_specs=[pl.BlockSpec(memory_space=pltpu.MemorySpace.VMEM)] * 9,
        out_specs=pl.BlockSpec(memory_space=pltpu.MemorySpace.VMEM),
    )(
        x_ids.reshape(T * B, 1).astype(jnp.int32),           # (T*B, 1) ids
        params["embed"],                                      # (V, E)
        jnp.transpose(params["w_ih"]),                        # (E, 4H)
        (params["b_ih"] + params["b_hh"]).reshape(1, -1),     # (1, 4H)
        jnp.transpose(params["w_hh"]),                        # (H, 4H)
        jnp.transpose(params["w1"]),                          # (H, 16)
        params["b1"].reshape(1, -1),                          # (1, 16)
        jnp.transpose(params["w2"]),                          # (16, O)
        params["b2"].reshape(1, -1),                          # (1, O)
    )


# ----------------------------- Pure-JAX reference -----------------------------

def reference_forward(x_ids, p):
    emb = p["embed"][x_ids]                               # (T, B, E)
    H = p["w_hh"].shape[1]
    B = emb.shape[1]

    def step(carry, x_t):
        h, c = carry
        gates = x_t @ p["w_ih"].T + p["b_ih"] + h @ p["w_hh"].T + p["b_hh"]
        i, f, g, o = jnp.split(gates, 4, axis=-1)
        i, f, g, o = jax.nn.sigmoid(i), jax.nn.sigmoid(f), jnp.tanh(g), jax.nn.sigmoid(o)
        c = f * c + i * g
        h = o * jnp.tanh(c)
        return (h, c), h

    init = (jnp.zeros((B, H), jnp.float32), jnp.zeros((B, H), jnp.float32))
    _, outputs = jax.lax.scan(step, init, emb)            # (T, B, H)
    maxpool = outputs.max(axis=1)                         # (T, H)  (torch.max(output, 1))
    hid = jnp.maximum(maxpool @ p["w1"].T + p["b1"], 0.0)
    return hid @ p["w2"].T + p["b2"]


# ----------------------------- Main -----------------------------

if __name__ == "__main__":
    # Module hyperparameters (small, consistent with the forward).
    T, B = 2, 8            # x is (T, B) token ids: T = LSTM time axis, B = LSTM batch axis
    vocab_size = 50
    embedding_length = 16
    hidden_size = 32
    output_size = 2

    key = jax.random.PRNGKey(0)
    ks = jax.random.split(key, 10)
    bound = 1.0 / jnp.sqrt(hidden_size)

    params = {
        "embed": jax.random.normal(ks[0], (vocab_size, embedding_length), jnp.float32),
        # nn.LSTM(embedding_length, hidden_size): PyTorch layouts / gate order (i,f,g,o)
        "w_ih": jax.random.uniform(ks[1], (4 * hidden_size, embedding_length), jnp.float32, -bound, bound),
        "w_hh": jax.random.uniform(ks[2], (4 * hidden_size, hidden_size), jnp.float32, -bound, bound),
        "b_ih": jax.random.uniform(ks[3], (4 * hidden_size,), jnp.float32, -bound, bound),
        "b_hh": jax.random.uniform(ks[4], (4 * hidden_size,), jnp.float32, -bound, bound),
        # nn.Linear(hidden_size, 16)
        "w1": jax.random.uniform(ks[5], (16, hidden_size), jnp.float32, -bound, bound),
        "b1": jax.random.uniform(ks[6], (16,), jnp.float32, -bound, bound),
        # nn.Linear(16, output_size)
        "w2": jax.random.uniform(ks[7], (output_size, 16), jnp.float32, -0.25, 0.25),
        "b2": jax.random.uniform(ks[8], (output_size,), jnp.float32, -0.25, 0.25),
    }

    x_ids = jax.random.randint(ks[9], (T, B), 0, vocab_size, dtype=jnp.int32)

    out = lstm_classifier_forward(x_ids, params)
    out = jax.block_until_ready(out)

    ref = jax.block_until_ready(reference_forward(x_ids, params))
    assert out.shape == (T, output_size), out.shape
    assert jnp.allclose(out, ref, atol=1e-4, rtol=1e-4), (out, ref)

    print("KERNEL_OK")
</pallas_src>

<mosaic_0001>
module attributes {stable_mosaic.version = 11 : i64} {
  func.func @fused_lstm_classifier_kernel(%arg0: memref<16x1xi32, #tpu.memory_space<vmem>>, %arg1: memref<50x16xf32, #tpu.memory_space<vmem>>, %arg2: memref<16x128xf32, #tpu.memory_space<vmem>>, %arg3: memref<1x128xf32, #tpu.memory_space<vmem>>, %arg4: memref<32x128xf32, #tpu.memory_space<vmem>>, %arg5: memref<32x16xf32, #tpu.memory_space<vmem>>, %arg6: memref<1x16xf32, #tpu.memory_space<vmem>>, %arg7: memref<16x2xf32, #tpu.memory_space<vmem>>, %arg8: memref<1x2xf32, #tpu.memory_space<vmem>>, %arg9: memref<2x2xf32, #tpu.memory_space<vmem>>) attributes {dimension_semantics = [], scalar_prefetch = 0 : i64, scratch_operands = 0 : i64, tpu.core_type = #tpu.core_type<tc>} {
    %c0 = arith.constant 0 : index
    %c0_0 = arith.constant 0 : index
    %0 = vector.load %arg1[%c0, %c0_0] : memref<50x16xf32, #tpu.memory_space<vmem>>, vector<50x16xf32>
    %c0_1 = arith.constant 0 : index
    %c0_2 = arith.constant 0 : index
    %1 = vector.load %arg2[%c0_1, %c0_2] : memref<16x128xf32, #tpu.memory_space<vmem>>, vector<16x128xf32>
    %cst = arith.constant dense<0.000000e+00> : vector<50x128xf32>
    %2 = tpu.matmul %0, %1, %cst {dimension_numbers = #tpu.dot_dimension_numbers<[1], [0], [0], [1], [0, 0, 1, 1], [], []>} : vector<50x16xf32>, vector<16x128xf32>, vector<50x128xf32> -> vector<50x128xf32>
    %c0_3 = arith.constant 0 : index
    %c0_4 = arith.constant 0 : index
    %3 = vector.load %arg3[%c0_3, %c0_4] : memref<1x128xf32, #tpu.memory_space<vmem>>, vector<1x128xf32>
    %4 = vector.broadcast %3 : vector<1x128xf32> to vector<50x128xf32>
    %5 = arith.addf %2, %4 : vector<50x128xf32>
    %c0_5 = arith.constant 0 : index
    %c0_6 = arith.constant 0 : index
    %6 = vector.load %arg0[%c0_5, %c0_6] : memref<16x1xi32, #tpu.memory_space<vmem>>, vector<16x1xi32>
    %7 = tpu.iota {dimensions = array<i32: 1>} : vector<16x50xi32>
    %8 = vector.broadcast %6 : vector<16x1xi32> to vector<16x50xi32>
    %9 = arith.cmpi eq, %7, %8 : vector<16x50xi32>
    %10 = arith.extui %9 : vector<16x50xi1> to vector<16x50xi32>
    %11 = arith.sitofp %10 : vector<16x50xi32> to vector<16x50xf32>
    %cst_7 = arith.constant dense<0.000000e+00> : vector<16x128xf32>
    %12 = tpu.matmul %11, %5, %cst_7 {dimension_numbers = #tpu.dot_dimension_numbers<[1], [0], [0], [1], [0, 0, 1, 1], [], []>} : vector<16x50xf32>, vector<50x128xf32>, vector<16x128xf32> -> vector<16x128xf32>
    %c0_8 = arith.constant 0 : index
    %c0_9 = arith.constant 0 : index
    %13 = vector.load %arg4[%c0_8, %c0_9] : memref<32x128xf32, #tpu.memory_space<vmem>>, vector<32x128xf32>
    %cst_10 = arith.constant 0.000000e+00 : f32
    %14 = vector.broadcast %cst_10 : f32 to vector<8x32xf32>
    %cst_11 = arith.constant 0.000000e+00 : f32
    %15 = vector.broadcast %cst_11 : f32 to vector<8x32xf32>
    %16 = vector.extract_strided_slice %12 {offsets = [0, 0], sizes = [8, 128], strides = [1, 1]} : vector<16x128xf32> to vector<8x128xf32>
    %cst_12 = arith.constant dense<0.000000e+00> : vector<8x128xf32>
    %17 = tpu.matmul %14, %13, %cst_12 {dimension_numbers = #tpu.dot_dimension_numbers<[1], [0], [0], [1], [0, 0, 1, 1], [], []>} : vector<8x32xf32>, vector<32x128xf32>, vector<8x128xf32> -> vector<8x128xf32>
    %18 = arith.addf %16, %17 : vector<8x128xf32>
    %19 = arith.negf %18 : vector<8x128xf32>
    %20 = math.exp %19 : vector<8x128xf32>
    %cst_13 = arith.constant 1.000000e+00 : f32
    %21 = vector.broadcast %cst_13 : f32 to vector<8x128xf32>
    %22 = arith.addf %21, %20 : vector<8x128xf32>
    %23 = arith.divf %21, %22 : vector<8x128xf32>
    %24 = math.tanh %18 : vector<8x128xf32>
    %25 = vector.extract_strided_slice %23 {offsets = [0, 0], sizes = [8, 32], strides = [1, 1]} : vector<8x128xf32> to vector<8x32xf32>
    %26 = vector.extract_strided_slice %23 {offsets = [0, 32], sizes = [8, 32], strides = [1, 1]} : vector<8x128xf32> to vector<8x32xf32>
    %27 = vector.extract_strided_slice %24 {offsets = [0, 64], sizes = [8, 32], strides = [1, 1]} : vector<8x128xf32> to vector<8x32xf32>
    %28 = vector.extract_strided_slice %23 {offsets = [0, 96], sizes = [8, 32], strides = [1, 1]} : vector<8x128xf32> to vector<8x32xf32>
    %29 = arith.mulf %26, %15 : vector<8x32xf32>
    %30 = arith.mulf %25, %27 : vector<8x32xf32>
    %31 = arith.addf %29, %30 : vector<8x32xf32>
    %32 = math.tanh %31 : vector<8x32xf32>
    %33 = arith.mulf %28, %32 : vector<8x32xf32>
    %cst_14 = arith.constant dense<0xFF800000> : vector<32xf32>
    %34 = vector.multi_reduction <maximumf>, %33, %cst_14 [0] : vector<8x32xf32> to vector<32xf32>
    %35 = vector.shape_cast %34 : vector<32xf32> to vector<1x32xf32>
    %36 = vector.extract_strided_slice %12 {offsets = [8, 0], sizes = [8, 128], strides = [1, 1]} : vector<16x128xf32> to vector<8x128xf32>
    %cst_15 = arith.constant dense<0.000000e+00> : vector<8x128xf32>
    %37 = tpu.matmul %33, %13, %cst_15 {dimension_numbers = #tpu.dot_dimension_numbers<[1], [0], [0], [1], [0, 0, 1, 1], [], []>} : vector<8x32xf32>, vector<32x128xf32>, vector<8x128xf32> -> vector<8x128xf32>
    %38 = arith.addf %36, %37 : vector<8x128xf32>
    %39 = arith.negf %38 : vector<8x128xf32>
    %40 = math.exp %39 : vector<8x128xf32>
    %cst_16 = arith.constant 1.000000e+00 : f32
    %41 = vector.broadcast %cst_16 : f32 to vector<8x128xf32>
    %42 = arith.addf %41, %40 : vector<8x128xf32>
    %43 = arith.divf %41, %42 : vector<8x128xf32>
    %44 = math.tanh %38 : vector<8x128xf32>
    %45 = vector.extract_strided_slice %43 {offsets = [0, 0], sizes = [8, 32], strides = [1, 1]} : vector<8x128xf32> to vector<8x32xf32>
    %46 = vector.extract_strided_slice %43 {offsets = [0, 32], sizes = [8, 32], strides = [1, 1]} : vector<8x128xf32> to vector<8x32xf32>
    %47 = vector.extract_strided_slice %44 {offsets = [0, 64], sizes = [8, 32], strides = [1, 1]} : vector<8x128xf32> to vector<8x32xf32>
    %48 = vector.extract_strided_slice %43 {offsets = [0, 96], sizes = [8, 32], strides = [1, 1]} : vector<8x128xf32> to vector<8x32xf32>
    %49 = arith.mulf %46, %31 : vector<8x32xf32>
    %50 = arith.mulf %45, %47 : vector<8x32xf32>
    %51 = arith.addf %49, %50 : vector<8x32xf32>
    %52 = math.tanh %51 : vector<8x32xf32>
    %53 = arith.mulf %48, %52 : vector<8x32xf32>
    %cst_17 = arith.constant dense<0xFF800000> : vector<32xf32>
    %54 = vector.multi_reduction <maximumf>, %53, %cst_17 [0] : vector<8x32xf32> to vector<32xf32>
    %55 = vector.shape_cast %54 : vector<32xf32> to vector<1x32xf32>
    %56 = tpu.concatenate %35, %55 in 0 : vector<1x32xf32>, vector<1x32xf32> -> vector<2x32xf32>
    %c0_18 = arith.constant 0 : index
    %c0_19 = arith.constant 0 : index
    %57 = vector.load %arg5[%c0_18, %c0_19] : memref<32x16xf32, #tpu.memory_space<vmem>>, vector<32x16xf32>
    %cst_20 = arith.constant dense<0.000000e+00> : vector<2x16xf32>
    %58 = tpu.matmul %56, %57, %cst_20 {dimension_numbers = #tpu.dot_dimension_numbers<[1], [0], [0], [1], [0, 0, 1, 1], [], []>} : vector<2x32xf32>, vector<32x16xf32>, vector<2x16xf32> -> vector<2x16xf32>
    %c0_21 = arith.constant 0 : index
    %c0_22 = arith.constant 0 : index
    %59 = vector.load %arg6[%c0_21, %c0_22] : memref<1x16xf32, #tpu.memory_space<vmem>>, vector<1x16xf32>
    %60 = vector.broadcast %59 : vector<1x16xf32> to vector<2x16xf32>
    %61 = arith.addf %58, %60 : vector<2x16xf32>
    %cst_23 = arith.constant 0.000000e+00 : f32
    %62 = vector.broadcast %cst_23 : f32 to vector<2x16xf32>
    %63 = arith.maximumf %61, %62 : vector<2x16xf32>
    %c0_24 = arith.constant 0 : index
    %c0_25 = arith.constant 0 : index
    %64 = vector.load %arg7[%c0_24, %c0_25] : memref<16x2xf32, #tpu.memory_space<vmem>>, vector<16x2xf32>
    %cst_26 = arith.constant dense<0.000000e+00> : vector<2x2xf32>
    %65 = tpu.matmul %63, %64, %cst_26 {dimension_numbers = #tpu.dot_dimension_numbers<[1], [0], [0], [1], [0, 0, 1, 1], [], []>} : vector<2x16xf32>, vector<16x2xf32>, vector<2x2xf32> -> vector<2x2xf32>
    %c0_27 = arith.constant 0 : index
    %c0_28 = arith.constant 0 : index
    %66 = vector.load %arg8[%c0_27, %c0_28] : memref<1x2xf32, #tpu.memory_space<vmem>>, vector<1x2xf32>
    %67 = vector.broadcast %66 : vector<1x2xf32> to vector<2x2xf32>
    %68 = arith.addf %65, %67 : vector<2x2xf32>
    %c0_29 = arith.constant 0 : index
    %c0_30 = arith.constant 0 : index
    %69 = vector.load %arg9[%c0_29, %c0_30] : memref<2x2xf32, #tpu.memory_space<vmem>>, vector<2x2xf32>
    tpu.vector_store %arg9[%c0_29, %c0_30], %68 {strides = array<i32>} : memref<2x2xf32, #tpu.memory_space<vmem>>, vector<2x2xf32>,
    return
  }
}

</mosaic_0001>

<llo_original>
// kernel: lstm_classifier_forward.1
$region0: #{lstm_classifier_forward.1}
  #allocation0 [shape = 'u32[]', space=smem, size = 0x4, offset = 0x4, fixed_abs, tag = 'smem constant byte address 0x4 - core index']
  #allocation1 [shape = 'u32[144,128]{1,0:T(1,128)}', space=vmem, size = 0x12000, scoped, tag = 'internal scratch']
  %s0 = inlined_call_operand.vmem [shape: s32[16,1], index: 0, kind: input, shape index: {}]
  %s1 = inlined_call_operand.vmem [shape: f32[50,16], index: 1, kind: input, shape index: {}]
  %s2 = inlined_call_operand.vmem [shape: f32[16,128], index: 2, kind: input, shape index: {}]
  %s3 = inlined_call_operand.vmem [shape: f32[1,128], index: 3, kind: input, shape index: {}]
  %s4 = inlined_call_operand.vmem [shape: f32[32,128], index: 4, kind: input, shape index: {}]
  %s5 = inlined_call_operand.vmem [shape: f32[32,16], index: 5, kind: input, shape index: {}]
  %s6 = inlined_call_operand.vmem [shape: f32[1,16], index: 6, kind: input, shape index: {}]
  %s7 = inlined_call_operand.vmem [shape: f32[16,2], index: 7, kind: input, shape index: {}]
  %s8 = inlined_call_operand.vmem [shape: f32[1,2], index: 8, kind: input, shape index: {}]
  %s9 = inlined_call_operand.hbm [shape: f32[2,2], index: 9, kind: output, shape index: {}]
  %s10 = sld [smem:[#allocation0]]
  $region46: #{lstm_classifier_forward.1} parent=0
    _
  %s12 = ssub.s32 1, %s10
  %s13 = scalar_select 0, %s12, %s10
  $region1: #{lstm_classifier_forward.1} parent=0
    #allocation2 [shape = 'u8[1024]{0}', space=vmem, size = 0x400, scoped, tag = 'output window, operand 0, single buffered']
    #allocation3 [shape = 's32[1]{0}', space=sflag, size = 0x4, scoped, tag = 'scoped memory for lstm_classifier_forward.1']
    %14 = vsyncpa [#allocation3], 0
    // Predicated region
    $region2: #{lstm_classifier_forward.1} parent=1 // pred_check
      _
    $region3: #{lstm_classifier_forward.1} parent=1 // pred_check_branch
      %16 = sbr.rel (0) target = $region5
    $region4: #{lstm_classifier_forward.1} parent=1 // pred_region
      _
    $region5: #{lstm_classifier_forward.1} parent=1 // pred_fallthru
      _
    // Predicated region
    $region6: #{lstm_classifier_forward.1} parent=1 // pred_check
      _
    $region7: #{lstm_classifier_forward.1} parent=1 // pred_check_branch
      %18 = sbr.rel (0) target = $region9
    $region8: #{lstm_classifier_forward.1} parent=1 // pred_region
      _
    $region9: #{lstm_classifier_forward.1} parent=1 // pred_fallthru
      _
    // Predicated region
    $region10: #{lstm_classifier_forward.1} parent=1 // pred_check
      _
    $region11: #{lstm_classifier_forward.1} parent=1 // pred_check_branch
      %20 = sbr.rel (0) target = $region13
    $region12: #{lstm_classifier_forward.1} parent=1 // pred_region
      _
    $region13: #{lstm_classifier_forward.1} parent=1 // pred_fallthru
      _
    // Predicated region
    $region14: #{lstm_classifier_forward.1} parent=1 // pred_check
      _
    $region15: #{lstm_classifier_forward.1} parent=1 // pred_check_branch
      %22 = sbr.rel (0) target = $region17
    $region16: #{lstm_classifier_forward.1} parent=1 // pred_region
      _
    $region17: #{lstm_classifier_forward.1} parent=1 // pred_fallthru
      _
    // Predicated region
    $region18: #{lstm_classifier_forward.1} parent=1 // pred_check
      _
    $region19: #{lstm_classifier_forward.1} parent=1 // pred_check_branch
      %24 = sbr.rel (0) target = $region21
    $region20: #{lstm_classifier_forward.1} parent=1 // pred_region
      _
    $region21: #{lstm_classifier_forward.1} parent=1 // pred_fallthru
      _
    // Predicated region
    $region22: #{lstm_classifier_forward.1} parent=1 // pred_check
      _
    $region23: #{lstm_classifier_forward.1} parent=1 // pred_check_branch
      %26 = sbr.rel (0) target = $region25
    $region24: #{lstm_classifier_forward.1} parent=1 // pred_region
      _
    $region25: #{lstm_classifier_forward.1} parent=1 // pred_fallthru
      _
    // Predicated region
    $region26: #{lstm_classifier_forward.1} parent=1 // pred_check
      _
    $region27: #{lstm_classifier_forward.1} parent=1 // pred_check_branch
      %28 = sbr.rel (0) target = $region29
    $region28: #{lstm_classifier_forward.1} parent=1 // pred_region
      _
    $region29: #{lstm_classifier_forward.1} parent=1 // pred_fallthru
      _
    // Predicated region
    $region30: #{lstm_classifier_forward.1} parent=1 // pred_check
      _
    $region31: #{lstm_classifier_forward.1} parent=1 // pred_check_branch
      %30 = sbr.rel (0) target = $region33
    $region32: #{lstm_classifier_forward.1} parent=1 // pred_region
      _
    $region33: #{lstm_classifier_forward.1} parent=1 // pred_fallthru
      _
    // Predicated region
    $region34: #{lstm_classifier_forward.1} parent=1 // pred_check
      _
    $region35: #{lstm_classifier_forward.1} parent=1 // pred_check_branch
      %32 = sbr.rel (0) target = $region37
    $region36: #{lstm_classifier_forward.1} parent=1 // pred_region
      _
    $region37: #{lstm_classifier_forward.1} parent=1 // pred_fallthru
      _
    %v33 = vld [vmem:[%s1] sm:$0xff]
    %v34 = vld [vmem:[%s1 + $0x8] sm:$0xff]
    %v35 = vld [vmem:[%s1 + $0x10] sm:$0xff]
    %v36 = vld [vmem:[%s1 + $0x18] sm:$0xff]
    %v37 = vld [vmem:[%s1 + $0x20] sm:$0xff]
    %v38 = vld [vmem:[%s1 + $0x28] sm:$0xff]
    %v39 = vld [vmem:[%s1 + $0x30] sm:$0x3]
    %v40 = vld [vmem:[%s2] sm:$0xff]
    %v41 = vld [vmem:[%s2 + $0x8] sm:$0xff]
    %v42 = vld [vmem:[%s3] sm:$0x1]
    %v44 = vlaneseq
    %v45 = vshrl.u32 %v44, 7
    %v46 = vsub.s32 0, %v45
    %v47 = vrot.slane %v42, %v46
    %vm49 = vcmask 130048
    %v51 = vsel %vm49, %v33, 0
    %v54 = vsel %vm49, %v34, 0
    %v57 = vsel %vm49, %v35, 0
    %v60 = vsel %vm49, %v36, 0
    %v63 = vsel %vm49, %v37, 0
    %v66 = vsel %vm49, %v38, 0
    %v69 = vsel %vm49, %v39, 0
    %71 = vmatprep.subr.mxu0 0.0
    %72 = vmatpush1.msra.mxu0 %v40
    %73 = vmatprep.subr.mxu0 0.0
    %74 = vmatpush1.msra.mxu0 %v41
    %75 = vmatprep.subr.mxu0 0.0
    %76 = vmatpush1.msra.mxu0 0.0
    %77 = vmatprep.subr.mxu0 0.0
    %78 = vmatpush1.msra.mxu0 0.0
    %79 = vmatprep.subr.mxu0 0.0
    %80 = vmatpush1.msra.mxu0 0.0
    %81 = vmatprep.subr.mxu0 0.0
    %82 = vmatpush1.msra.mxu0 0.0
    %83 = vmatprep.subr.mxu0 0.0
    %84 = vmatpush1.msra.mxu0 0.0
    %85 = vmatprep.subr.mxu0 0.0
    %86 = vmatpush1.msra.mxu0 0.0
    %87 = vmatprep.subr.mxu0 0.0
    %88 = vmatpush1.msra.mxu0 0.0
    %89 = vmatprep.subr.mxu0 0.0
    %90 = vmatpush1.msra.mxu0 0.0
    %91 = vmatprep.subr.mxu0 0.0
    %92 = vmatpush1.msra.mxu0 0.0
    %93 = vmatprep.subr.mxu0 0.0
    %94 = vmatpush1.msra.mxu0 0.0
    %95 = vmatprep.subr.mxu0 0.0
    %96 = vmatpush1.msra.mxu0 0.0
    %97 = vmatprep.subr.mxu0 0.0
    %98 = vmatpush1.msra.mxu0 0.0
    %99 = vmatprep.subr.mxu0 0.0
    %100 = vmatpush1.msra.mxu0 0.0
    %101 = vmatprep.subr.mxu0 0.0
    %102 = vmatpush1.msra.mxu0 0.0
    %103 = vmatprep.subr.mxu0 0.0
    %104 = vmatpush1.msra.mxu0 0.0
    %105 = vmatprep.subr.mxu0 0.0
    %106 = vmatpush1.msra.mxu0 0.0
    %107 = vmatprep.subr.mxu0 0.0
    %108 = vmatpush1.msra.mxu0 0.0
    %109 = vmatprep.subr.mxu0 0.0
    %110 = vmatpush1.msra.mxu0 0.0
    %111 = vmatprep.subr.mxu0 0.0
    %112 = vmatpush1.msra.mxu0 0.0
    %113 = vmatprep.subr.mxu0 0.0
    %114 = vmatpush1.msra.mxu0 0.0
    %115 = vmatprep.subr.mxu0 0.0
    %116 = vmatpush1.msra.mxu0 0.0
    %117 = vmatprep.subr.mxu0 0.0
    %118 = vmatpush1.msra.mxu0 0.0
    %119 = vmatprep.subr.mxu0 0.0
    %120 = vmatpush1.msra.mxu0 0.0
    %121 = vmatprep.subr.mxu0 0.0
    %122 = vmatpush1.msra.mxu0 0.0
    %123 = vmatprep.subr.mxu0 0.0
    %124 = vmatpush1.msra.mxu0 0.0
    %125 = vmatprep.subr.mxu0 0.0
    %126 = vmatpush1.msra.mxu0 0.0
    %127 = vmatprep.subr.mxu0 0.0
    %128 = vmatpush1.msra.mxu0 0.0
    %129 = vmatprep.subr.mxu0 0.0
    %130 = vmatpush1.msra.mxu0 0.0
    %131 = vmatprep.subr.mxu0 0.0
    %132 = vmatpush1.msra.mxu0 0.0
    %133 = vmatprep.subr.mxu0 0.0
    %134 = vmatpush1.msra.mxu0 0.0
    %135 = vmatprep.mubr.f32.mxu0 0.0
    %136 = vmatmul.mubr.f32.gmra.mrb[0].mxu0 %v51
    %v137 = vpop.f32.mrb[0].mxu0
    %v138 = vadd.f32 %v47, %v137
    %v139 = vpop.f32.mrb[0].mxu0
    %140 = vmatprep.mubr.f32.mxu0 0.0
    %141 = vmatmul.mubr.f32.gmra.mrb[0].mxu0 %v54
    %v142 = vpop.f32.mrb[0].mxu0
    %v143 = vadd.f32 %v47, %v142
    %v144 = vpop.f32.mrb[0].mxu0
    %145 = vmatprep.mubr.f32.mxu0 0.0
    %146 = vmatmul.mubr.f32.gmra.mrb[0].mxu0 %v57
    %v147 = vpop.f32.mrb[0].mxu0
    %v148 = vadd.f32 %v47, %v147
    %v149 = vpop.f32.mrb[0].mxu0
    %150 = vmatprep.mubr.f32.mxu0 0.0
    %151 = vmatmul.mubr.f32.gmra.mrb[0].mxu0 %v60
    %v152 = vpop.f32.mrb[0].mxu0
    %v153 = vadd.f32 %v47, %v152
    %v154 = vpop.f32.mrb[0].mxu0
    %155 = vmatprep.mubr.f32.mxu0 0.0
    %156 = vmatmul.mubr.f32.gmra.mrb[0].mxu0 %v63
    %v157 = vpop.f32.mrb[0].mxu0
    %v158 = vadd.f32 %v47, %v157
    %v159 = vpop.f32.mrb[0].mxu0
    %160 = vmatprep.mubr.f32.mxu0 0.0
    %161 = vmatmul.mubr.f32.gmra.mrb[0].mxu0 %v66
    %v162 = vpop.f32.mrb[0].mxu0
    %v163 = vadd.f32 %v47, %v162
    %v164 = vpop.f32.mrb[0].mxu0
    %165 = vmatprep.mubr.f32.mxu0 0.0
    %166 = vmatmul.mubr.f32.gmra.mrb[0].mxu0 %v69
    %v167 = vpop.f32.mrb[0].mxu0
    %v168 = vadd.f32 %v47, %v167
    %v169 = vpop.f32.mrb[0].mxu0
    %170 = vdwg.mxu0
    %v171 = vld [vmem:[%s0] sm:$0xff]
    %v172 = vld [vmem:[%s0 + $0x8] sm:$0xff]
    %v173 = vlaneseq
    %v174 = vand.u32 %v173, 127
    %175 = vset.pattern.permute.xlu0 0
    %176 = vperm.xlu0 %175, %v171
    %v177 = vpop.permute.xlu0 %176
    %178 = vset.pattern.permute.xlu0 0
    %179 = vperm.xlu0 %178, %v172
    %v180 = vpop.permute.xlu0 %179
    %vm181 = vcmp.eq.s32.totalorder %v174, %v177
    %vm182 = vcmp.eq.s32.totalorder %v174, %v180
    %v183 = vsel %vm181, 1, 0
    %v184 = vsel %vm182, 1, 0
    %v185 = vcvt.s32.f32 %v183
    %v186 = vcvt.s32.f32 %v184
    %vm187 = vcmask 408576
    %v189 = vsel %vm187, %v185, 0
    %v192 = vsel %vm187, %v186, 0
    %vm194 = vcmask 1041408
    %v196 = vsel %vm194, %v168, 0
    %198 = vmatprep.subr.mxu0 0.0
    %199 = vmatpush1.msra.mxu0 %v138
    %200 = vmatprep.subr.mxu0 0.0
    %201 = vmatpush1.msra.mxu0 %v143
    %202 = vmatprep.subr.mxu0 0.0
    %203 = vmatpush1.msra.mxu0 %v148
    %204 = vmatprep.subr.mxu0 0.0
    %205 = vmatpush1.msra.mxu0 %v153
    %206 = vmatprep.subr.mxu0 0.0
    %207 = vmatpush1.msra.mxu0 %v158
    %208 = vmatprep.subr.mxu0 0.0
    %209 = vmatpush1.msra.mxu0 %v163
    %210 = vmatprep.subr.mxu0 0.0
    %211 = vmatpush1.msra.mxu0 %v196
    %212 = vmatprep.subr.mxu0 0.0
    %213 = vmatpush1.msra.mxu0 0.0
    %214 = vmatprep.subr.mxu0 0.0
    %215 = vmatpush1.msra.mxu0 0.0
    %216 = vmatprep.subr.mxu0 0.0
    %217 = vmatpush1.msra.mxu0 0.0
    %218 = vmatprep.subr.mxu0 0.0
    %219 = vmatpush1.msra.mxu0 0.0
    %220 = vmatprep.subr.mxu0 0.0
    %221 = vmatpush1.msra.mxu0 0.0
    %222 = vmatprep.subr.mxu0 0.0
    %223 = vmatpush1.msra.mxu0 0.0
    %224 = vmatprep.subr.mxu0 0.0
    %225 = vmatpush1.msra.mxu0 0.0
    %226 = vmatprep.subr.mxu0 0.0
    %227 = vmatpush1.msra.mxu0 0.0
    %228 = vmatprep.subr.mxu0 0.0
    %229 = vmatpush1.msra.mxu0 0.0
    %230 = vmatprep.subr.mxu0 0.0
    %231 = vmatpush1.msra.mxu0 0.0
    %232 = vmatprep.subr.mxu0 0.0
    %233 = vmatpush1.msra.mxu0 0.0
    %234 = vmatprep.subr.mxu0 0.0
    %235 = vmatpush1.msra.mxu0 0.0
    %236 = vmatprep.subr.mxu0 0.0
    %237 = vmatpush1.msra.mxu0 0.0
    %238 = vmatprep.subr.mxu0 0.0
    %239 = vmatpush1.msra.mxu0 0.0
    %240 = vmatprep.subr.mxu0 0.0
    %241 = vmatpush1.msra.mxu0 0.0
    %242 = vmatprep.subr.mxu0 0.0
    %243 = vmatpush1.msra.mxu0 0.0
    %244 = vmatprep.subr.mxu0 0.0
    %245 = vmatpush1.msra.mxu0 0.0
    %246 = vmatprep.subr.mxu0 0.0
    %247 = vmatpush1.msra.mxu0 0.0
    %248 = vmatprep.subr.mxu0 0.0
    %249 = vmatpush1.msra.mxu0 0.0
    %250 = vmatprep.subr.mxu0 0.0
    %251 = vmatpush1.msra.mxu0 0.0
    %252 = vmatprep.subr.mxu0 0.0
    %253 = vmatpush1.msra.mxu0 0.0
    %254 = vmatprep.subr.mxu0 0.0
    %255 = vmatpush1.msra.mxu0 0.0
    %256 = vmatprep.subr.mxu0 0.0
    %257 = vmatpush1.msra.mxu0 0.0
    %258 = vmatprep.subr.mxu0 0.0
    %259 = vmatpush1.msra.mxu0 0.0
    %260 = vmatprep.subr.mxu0 0.0
    %261 = vmatpush1.msra.mxu0 0.0
    %262 = vmatprep.mubr.f32.mxu0 0.0
    %263 = vmatmul.mubr.f32.gmra.mrb[0].mxu0 %v189
    %v264 = vpop.f32.mrb[0].mxu0
    %v265 = vadd.f32 0.0, %v264
    %v266 = vpop.f32.mrb[0].mxu0
    %267 = vmatprep.mubr.f32.mxu0 0.0
    %268 = vmatmul.mubr.f32.gmra.mrb[0].mxu0 %v192
    %v269 = vpop.f32.mrb[0].mxu0
    %v270 = vadd.f32 0.0, %v269
    %v271 = vpop.f32.mrb[0].mxu0
    %272 = vdwg.mxu0
    %v273 = vld [vmem:[%s4] sm:$0xff]
    %v274 = vld [vmem:[%s4 + $0x8] sm:$0xff]
    %v275 = vld [vmem:[%s4 + $0x10] sm:$0xff]
    %v276 = vld [vmem:[%s4 + $0x18] sm:$0xff]
    %vm277 = vcmask 261120
    %v279 = vsel %vm277, 0.0, 0
    %281 = vmatprep.subr.mxu0 0.0
    %282 = vmatpush1.msra.mxu0 %v273
    %283 = vmatprep.subr.mxu0 0.0
    %284 = vmatpush1.msra.mxu0 %v274
    %285 = vmatprep.subr.mxu0 0.0
    %286 = vmatpush1.msra.mxu0 %v275
    %287 = vmatprep.subr.mxu0 0.0
    %288 = vmatpush1.msra.mxu0 %v276
    %289 = vmatprep.subr.mxu0 0.0
    %290 = vmatpush1.msra.mxu0 0.0
    %291 = vmatprep.subr.mxu0 0.0
    %292 = vmatpush1.msra.mxu0 0.0
    %293 = vmatprep.subr.mxu0 0.0
    %294 = vmatpush1.msra.mxu0 0.0
    %295 = vmatprep.subr.mxu0 0.0
    %296 = vmatpush1.msra.mxu0 0.0
    %297 = vmatprep.subr.mxu0 0.0
    %298 = vmatpush1.msra.mxu0 0.0
    %299 = vmatprep.subr.mxu0 0.0
    %300 = vmatpush1.msra.mxu0 0.0
    %301 = vmatprep.subr.mxu0 0.0
    %302 = vmatpush1.msra.mxu0 0.0
    %303 = vmatprep.subr.mxu0 0.0
    %304 = vmatpush1.msra.mxu0 0.0
    %305 = vmatprep.subr.mxu0 0.0
    %306 = vmatpush1.msra.mxu0 0.0
    %307 = vmatprep.subr.mxu0 0.0
    %308 = vmatpush1.msra.mxu0 0.0
    %309 = vmatprep.subr.mxu0 0.0
    %310 = vmatpush1.msra.mxu0 0.0
    %311 = vmatprep.subr.mxu0 0.0
    %312 = vmatpush1.msra.mxu0 0.0
    %313 = vmatprep.subr.mxu0 0.0
    %314 = vmatpush1.msra.mxu0 0.0
    %315 = vmatprep.subr.mxu0 0.0
    %316 = vmatpush1.msra.mxu0 0.0
    %317 = vmatprep.subr.mxu0 0.0
    %318 = vmatpush1.msra.mxu0 0.0
    %319 = vmatprep.subr.mxu0 0.0
    %320 = vmatpush1.msra.mxu0 0.0
    %321 = vmatprep.subr.mxu0 0.0
    %322 = vmatpush1.msra.mxu0 0.0
    %323 = vmatprep.subr.mxu0 0.0
    %324 = vmatpush1.msra.mxu0 0.0
    %325 = vmatprep.subr.mxu0 0.0
    %326 = vmatpush1.msra.mxu0 0.0
    %327 = vmatprep.subr.mxu0 0.0
    %328 = vmatpush1.msra.mxu0 0.0
    %329 = vmatprep.subr.mxu0 0.0
    %330 = vmatpush1.msra.mxu0 0.0
    %331 = vmatprep.subr.mxu0 0.0
    %332 = vmatpush1.msra.mxu0 0.0
    %333 = vmatprep.subr.mxu0 0.0
    %334 = vmatpush1.msra.mxu0 0.0
    %335 = vmatprep.subr.mxu0 0.0
    %336 = vmatpush1.msra.mxu0 0.0
    %337 = vmatprep.subr.mxu0 0.0
    %338 = vmatpush1.msra.mxu0 0.0
    %339 = vmatprep.subr.mxu0 0.0
    %340 = vmatpush1.msra.mxu0 0.0
    %341 = vmatprep.subr.mxu0 0.0
    %342 = vmatpush1.msra.mxu0 0.0
    %343 = vmatprep.subr.mxu0 0.0
    %344 = vmatpush1.msra.mxu0 0.0
    %345 = vmatprep.mubr.f32.mxu0 0.0
    %346 = vmatmul.mubr.f32.gmra.mrb[0].mxu0 %v279
    %v347 = vpop.f32.mrb[0].mxu0
    %v348 = vadd.f32 0.0, %v347
    %v349 = vpop.f32.mrb[0].mxu0
    %350 = vdwg.mxu0
    %v351 = vadd.f32 %v265, %v348
    %v352 = vxor.u32 %v351, 2147483648
    %v353 = vmul.f32 %v352, 1.442695
    %v354 = vpow.pop %v353
    %v355 = vadd.f32 %v354, 1.0
    %v356 = vrcp.pop %v355
    %v357 = vmul.f32 1.0, %v356
    %v358 = vtanh.pop %v351
    %v359 = vmul.f32 %v357, 0.0
    %361 = vrot.lane.b32.xlu0 %v358, 64
    %v362 = vpop.permute.xlu0 %361
    %v364 = vmul.f32 %v357, %v362
    %366 = vrot.lane.b32.xlu0 %v364, 32
    %v367 = vpop.permute.xlu0 %366
    %v369 = vadd.f32 %v359, %v367
    %v370 = vtanh.pop %v369
    %372 = vrot.lane.b32.xlu0 %v370, 64
    %v373 = vpop.permute.xlu0 %372
    %v375 = vmul.f32 %v357, %v373
    %vm376 = vcmask 1048320
    %v377 = vsel %vm376, %v375, -inf
    %v378 = vrot.slane %v377, 4
    %v379 = vmax.f32 %v377, %v378
    %v380 = vrot.slane %v379, 2
    %v381 = vmax.f32 %v379, %v380
    %v382 = vrot.slane %v381, 1
    %v383 = vmax.f32 %v381, %v382
    %385 = vrot.lane.b32.xlu0 %v375, 32
    %v386 = vpop.permute.xlu0 %385
    %v387 = vsel %vm277, %v386, 0
    %389 = vmatprep.subr.mxu0 0.0
    %390 = vmatpush1.msra.mxu0 %v273
    %391 = vmatprep.subr.mxu0 0.0
    %392 = vmatpush1.msra.mxu0 %v274
    %393 = vmatprep.subr.mxu0 0.0
    %394 = vmatpush1.msra.mxu0 %v275
    %395 = vmatprep.subr.mxu0 0.0
    %396 = vmatpush1.msra.mxu0 %v276
    %397 = vmatprep.subr.mxu0 0.0
    %398 = vmatpush1.msra.mxu0 0.0
    %399 = vmatprep.subr.mxu0 0.0
    %400 = vmatpush1.msra.mxu0 0.0
    %401 = vmatprep.subr.mxu0 0.0
    %402 = vmatpush1.msra.mxu0 0.0
    %403 = vmatprep.subr.mxu0 0.0
    %404 = vmatpush1.msra.mxu0 0.0
    %405 = vmatprep.subr.mxu0 0.0
    %406 = vmatpush1.msra.mxu0 0.0
    %407 = vmatprep.subr.mxu0 0.0
    %408 = vmatpush1.msra.mxu0 0.0
    %409 = vmatprep.subr.mxu0 0.0
    %410 = vmatpush1.msra.mxu0 0.0
    %411 = vmatprep.subr.mxu0 0.0
    %412 = vmatpush1.msra.mxu0 0.0
    %413 = vmatprep.subr.mxu0 0.0
    %414 = vmatpush1.msra.mxu0 0.0
    %415 = vmatprep.subr.mxu0 0.0
    %416 = vmatpush1.msra.mxu0 0.0
    %417 = vmatprep.subr.mxu0 0.0
    %418 = vmatpush1.msra.mxu0 0.0
    %419 = vmatprep.subr.mxu0 0.0
    %420 = vmatpush1.msra.mxu0 0.0
    %421 = vmatprep.subr.mxu0 0.0
    %422 = vmatpush1.msra.mxu0 0.0
    %423 = vmatprep.subr.mxu0 0.0
    %424 = vmatpush1.msra.mxu0 0.0
    %425 = vmatprep.subr.mxu0 0.0
    %426 = vmatpush1.msra.mxu0 0.0
    %427 = vmatprep.subr.mxu0 0.0
    %428 = vmatpush1.msra.mxu0 0.0
    %429 = vmatprep.subr.mxu0 0.0
    %430 = vmatpush1.msra.mxu0 0.0
    %431 = vmatprep.subr.mxu0 0.0
    %432 = vmatpush1.msra.mxu0 0.0
    %433 = vmatprep.subr.mxu0 0.0
    %434 = vmatpush1.msra.mxu0 0.0
    %435 = vmatprep.subr.mxu0 0.0
    %436 = vmatpush1.msra.mxu0 0.0
    %437 = vmatprep.subr.mxu0 0.0
    %438 = vmatpush1.msra.mxu0 0.0
    %439 = vmatprep.subr.mxu0 0.0
    %440 = vmatpush1.msra.mxu0 0.0
    %441 = vmatprep.subr.mxu0 0.0
    %442 = vmatpush1.msra.mxu0 0.0
    %443 = vmatprep.subr.mxu0 0.0
    %444 = vmatpush1.msra.mxu0 0.0
    %445 = vmatprep.subr.mxu0 0.0
    %446 = vmatpush1.msra.mxu0 0.0
    %447 = vmatprep.subr.mxu0 0.0
    %448 = vmatpush1.msra.mxu0 0.0
    %449 = vmatprep.subr.mxu0 0.0
    %450 = vmatpush1.msra.mxu0 0.0
    %451 = vmatprep.subr.mxu0 0.0
    %452 = vmatpush1.msra.mxu0 0.0
    %453 = vmatprep.mubr.f32.mxu0 0.0
    %454 = vmatmul.mubr.f32.gmra.mrb[0].mxu0 %v387
    %v455 = vpop.f32.mrb[0].mxu0
    %v456 = vadd.f32 0.0, %v455
    %v457 = vpop.f32.mrb[0].mxu0
    %458 = vdwg.mxu0
    %v459 = vadd.f32 %v270, %v456
    %v460 = vxor.u32 %v459, 2147483648
    %v461 = vmul.f32 %v460, 1.442695
    %v462 = vpow.pop %v461
    %v463 = vadd.f32 %v462, 1.0
    %v464 = vrcp.pop %v463
    %v465 = vmul.f32 1.0, %v464
    %v466 = vtanh.pop %v459
    %v467 = vmul.f32 %v465, %v369
    %469 = vrot.lane.b32.xlu0 %v466, 64
    %v470 = vpop.permute.xlu0 %469
    %v472 = vmul.f32 %v465, %v470
    %474 = vrot.lane.b32.xlu0 %v472, 32
    %v475 = vpop.permute.xlu0 %474
    %v477 = vadd.f32 %v467, %v475
    %v478 = vtanh.pop %v477
    %480 = vrot.lane.b32.xlu0 %v478, 64
    %v481 = vpop.permute.xlu0 %480
    %v483 = vmul.f32 %v465, %v481
    %v484 = vsel %vm376, %v483, -inf
    %v485 = vrot.slane %v484, 4
    %v486 = vmax.f32 %v484, %v485
    %v487 = vrot.slane %v486, 2
    %v488 = vmax.f32 %v486, %v487
    %v489 = vrot.slane %v488, 1
    %v490 = vmax.f32 %v488, %v489
    %vm491 = vcmask 1040384
    %v492 = vsel %vm491, %v383, %v490
    %v493 = vld [vmem:[%s5] sm:$0xff]
    %v494 = vld [vmem:[%s5 + $0x8] sm:$0xff]
    %v495 = vld [vmem:[%s5 + $0x10] sm:$0xff]
    %v496 = vld [vmem:[%s5 + $0x18] sm:$0xff]
    %v497 = vld [vmem:[%s6] sm:$0x1]
    %v499 = vlaneseq
    %v500 = vshrl.u32 %v499, 7
    %v501 = vsub.s32 0, %v500
    %v502 = vrot.slane %v497, %v501
    %505 = vrot.lane.b32.xlu0 %v492, 32
    %v506 = vpop.permute.xlu0 %505
    %v507 = vsel %vm277, %v506, 0
    %509 = vmatprep.subr.mxu0 0.0
    %510 = vmatpush1.msra.mxu0 %v493
    %511 = vmatprep.subr.mxu0 0.0
    %512 = vmatpush1.msra.mxu0 %v494
    %513 = vmatprep.subr.mxu0 0.0
    %514 = vmatpush1.msra.mxu0 %v495
    %515 = vmatprep.subr.mxu0 0.0
    %516 = vmatpush1.msra.mxu0 %v496
    %517 = vmatprep.subr.mxu0 0.0
    %518 = vmatpush1.msra.mxu0 0.0
    %519 = vmatprep.subr.mxu0 0.0
    %520 = vmatpush1.msra.mxu0 0.0
    %521 = vmatprep.subr.mxu0 0.0
    %522 = vmatpush1.msra.mxu0 0.0
    %523 = vmatprep.subr.mxu0 0.0
    %524 = vmatpush1.msra.mxu0 0.0
    %525 = vmatprep.subr.mxu0 0.0
    %526 = vmatpush1.msra.mxu0 0.0
    %527 = vmatprep.subr.mxu0 0.0
    %528 = vmatpush1.msra.mxu0 0.0
    %529 = vmatprep.subr.mxu0 0.0
    %530 = vmatpush1.msra.mxu0 0.0
    %531 = vmatprep.subr.mxu0 0.0
    %532 = vmatpush1.msra.mxu0 0.0
    %533 = vmatprep.subr.mxu0 0.0
    %534 = vmatpush1.msra.mxu0 0.0
    %535 = vmatprep.subr.mxu0 0.0
    %536 = vmatpush1.msra.mxu0 0.0
    %537 = vmatprep.subr.mxu0 0.0
    %538 = vmatpush1.msra.mxu0 0.0
    %539 = vmatprep.subr.mxu0 0.0
    %540 = vmatpush1.msra.mxu0 0.0
    %541 = vmatprep.subr.mxu0 0.0
    %542 = vmatpush1.msra.mxu0 0.0
    %543 = vmatprep.subr.mxu0 0.0
    %544 = vmatpush1.msra.mxu0 0.0
    %545 = vmatprep.subr.mxu0 0.0
    %546 = vmatpush1.msra.mxu0 0.0
    %547 = vmatprep.subr.mxu0 0.0
    %548 = vmatpush1.msra.mxu0 0.0
    %549 = vmatprep.subr.mxu0 0.0
    %550 = vmatpush1.msra.mxu0 0.0
    %551 = vmatprep.subr.mxu0 0.0
    %552 = vmatpush1.msra.mxu0 0.0
    %553 = vmatprep.subr.mxu0 0.0
    %554 = vmatpush1.msra.mxu0 0.0
    %555 = vmatprep.subr.mxu0 0.0
    %556 = vmatpush1.msra.mxu0 0.0
    %557 = vmatprep.subr.mxu0 0.0
    %558 = vmatpush1.msra.mxu0 0.0
    %559 = vmatprep.subr.mxu0 0.0
    %560 = vmatpush1.msra.mxu0 0.0
    %561 = vmatprep.subr.mxu0 0.0
    %562 = vmatpush1.msra.mxu0 0.0
    %563 = vmatprep.subr.mxu0 0.0
    %564 = vmatpush1.msra.mxu0 0.0
    %565 = vmatprep.subr.mxu0 0.0
    %566 = vmatpush1.msra.mxu0 0.0
    %567 = vmatprep.subr.mxu0 0.0
    %568 = vmatpush1.msra.mxu0 0.0
    %569 = vmatprep.subr.mxu0 0.0
    %570 = vmatpush1.msra.mxu0 0.0
    %571 = vmatprep.subr.mxu0 0.0
    %572 = vmatpush1.msra.mxu0 0.0
    %573 = vmatprep.mubr.f32.mxu0 0.0
    %574 = vmatmul.mubr.f32.gmra.mrb[0].mxu0 %v507
    %v575 = vpop.f32.mrb[0].mxu0
    %v576 = vadd.f32 %v502, %v575
    %v577 = vpop.f32.mrb[0].mxu0
    %578 = vdwg.mxu0
    %v579 = vmax.f32 %v576, 0.0
    %v580 = vld [vmem:[%s7] sm:$0xff]
    %v581 = vld [vmem:[%s7 + $0x8] sm:$0xff]
    %v582 = vld [vmem:[%s8] sm:$0x1]
    %v584 = vlaneseq
    %v585 = vshrl.u32 %v584, 7
    %v586 = vsub.s32 0, %v585
    %v587 = vrot.slane %v582, %v586
    %v590 = vsel %vm49, %v579, 0
    %592 = vmatprep.subr.mxu0 0.0
    %593 = vmatpush1.msra.mxu0 %v580
    %594 = vmatprep.subr.mxu0 0.0
    %595 = vmatpush1.msra.mxu0 %v581
    %596 = vmatprep.subr.mxu0 0.0
    %597 = vmatpush1.msra.mxu0 0.0
    %598 = vmatprep.subr.mxu0 0.0
    %599 = vmatpush1.msra.mxu0 0.0
    %600 = vmatprep.subr.mxu0 0.0
    %601 = vmatpush1.msra.mxu0 0.0
    %602 = vmatprep.subr.mxu0 0.0
    %603 = vmatpush1.msra.mxu0 0.0
    %604 = vmatprep.subr.mxu0 0.0
    %605 = vmatpush1.msra.mxu0 0.0
    %606 = vmatprep.subr.mxu0 0.0
    %607 = vmatpush1.msra.mxu0 0.0
    %608 = vmatprep.subr.mxu0 0.0
    %609 = vmatpush1.msra.mxu0 0.0
    %610 = vmatprep.subr.mxu0 0.0
    %611 = vmatpush1.msra.mxu0 0.0
    %612 = vmatprep.subr.mxu0 0.0
    %613 = vmatpush1.msra.mxu0 0.0
    %614 = vmatprep.subr.mxu0 0.0
    %615 = vmatpush1.msra.mxu0 0.0
    %616 = vmatprep.subr.mxu0 0.0
    %617 = vmatpush1.msra.mxu0 0.0
    %618 = vmatprep.subr.mxu0 0.0
    %619 = vmatpush1.msra.mxu0 0.0
    %620 = vmatprep.subr.mxu0 0.0
    %621 = vmatpush1.msra.mxu0 0.0
    %622 = vmatprep.subr.mxu0 0.0
    %623 = vmatpush1.msra.mxu0 0.0
    %624 = vmatprep.subr.mxu0 0.0
    %625 = vmatpush1.msra.mxu0 0.0
    %626 = vmatprep.subr.mxu0 0.0
    %627 = vmatpush1.msra.mxu0 0.0
    %628 = vmatprep.subr.mxu0 0.0
    %629 = vmatpush1.msra.mxu0 0.0
    %630 = vmatprep.subr.mxu0 0.0
    %631 = vmatpush1.msra.mxu0 0.0
    %632 = vmatprep.subr.mxu0 0.0
    %633 = vmatpush1.msra.mxu0 0.0
    %634 = vmatprep.subr.mxu0 0.0
    %635 = vmatpush1.msra.mxu0 0.0
    %636 = vmatprep.subr.mxu0 0.0
    %637 = vmatpush1.msra.mxu0 0.0
    %638 = vmatprep.subr.mxu0 0.0
    %639 = vmatpush1.msra.mxu0 0.0
    %640 = vmatprep.subr.mxu0 0.0
    %641 = vmatpush1.msra.mxu0 0.0
    %642 = vmatprep.subr.mxu0 0.0
    %643 = vmatpush1.msra.mxu0 0.0
    %644 = vmatprep.subr.mxu0 0.0
    %645 = vmatpush1.msra.mxu0 0.0
    %646 = vmatprep.subr.mxu0 0.0
    %647 = vmatpush1.msra.mxu0 0.0
    %648 = vmatprep.subr.mxu0 0.0
    %649 = vmatpush1.msra.mxu0 0.0
    %650 = vmatprep.subr.mxu0 0.0
    %651 = vmatpush1.msra.mxu0 0.0
    %652 = vmatprep.subr.mxu0 0.0
    %653 = vmatpush1.msra.mxu0 0.0
    %654 = vmatprep.subr.mxu0 0.0
    %655 = vmatpush1.msra.mxu0 0.0
    %656 = vmatprep.mubr.f32.mxu0 0.0
    %657 = vmatmul.mubr.f32.gmra.mrb[0].mxu0 %v590
    %v658 = vpop.f32.mrb[0].mxu0
    %v659 = vadd.f32 %v587, %v658
    %v660 = vpop.f32.mrb[0].mxu0
    %661 = vdwg.mxu0
    %vm662 = vcmask 9216
    %663 = vst.msk [vmem:[#allocation2] sm:$0x3] %vm662, %v659
    // Predicated region
    $region38: #{lstm_classifier_forward.1} parent=1 // pred_check
      _
    $region39: #{lstm_classifier_forward.1} parent=1 // pred_check_branch
      %665 = sbr.rel (0) target = $region41
    $region40: #{lstm_classifier_forward.1} parent=1 // pred_region
      %s667 = ssub.s32 32, 32
      %668 = vsyncadd [#allocation3], %s667
      %s670 = sshll.u32 [#allocation2], 4
      %s671 = int_to_ptr.vmem [resolvable:$true] %s670
      %673 = dma.vmem_to_hbm [thread:$0]  %s671, 32, %s9, [#allocation3]
    $region41: #{lstm_classifier_forward.1} parent=1 // pred_fallthru
      _
    // Predicated region
    $region42: #{lstm_classifier_forward.1} parent=1 // pred_check
      _
    $region43: #{lstm_classifier_forward.1} parent=1 // pred_check_branch
      %675 = sbr.rel (0) target = $region45
    $region44: #{lstm_classifier_forward.1} parent=1 // pred_region
      %676 = dma.done [#allocation3], 32
    $region45: #{lstm_classifier_forward.1} parent=1 // pred_fallthru
      _
    %677 = vsyncpa [#allocation3], 1

</llo_original>
